<compile_context>
chip_gen: v7x
topology: tpu7x:2x2x1
jax: 0.10.0
libtpu: 0.0.40
codegen_flags: <defaults>
</compile_context>

<pallas_src>
import functools

import jax
import jax.numpy as jnp
from jax.experimental import pallas as pl
from jax.experimental.pallas import tpu as pltpu


def _sublane_multiple(dtype) -> int:
    """Dtype-dependent sublane packing granularity."""
    bits = jnp.dtype(dtype).itemsize * 8
    if bits >= 32:
        return 8
    if bits == 16:
        return 16
    return 32


def _normalize_kernel(scale_ref, bias_ref, img_ref, out_ref, *, block_rows):
    # scale_ref / bias_ref: resident (pad_rows, 1) f32 arrays (constant block
    #   index -> DMA'd into VMEM once), sliced per grid step below.
    # img_ref / out_ref: (block_rows, block_lanes) tile of the (N*C, H*W) view.
    i = pl.program_id(0)
    r0 = i * block_rows
    if block_rows % 8 == 0:
        r0 = pl.multiple_of(r0, 8)
    scale = scale_ref[pl.ds(r0, block_rows), :]
    bias = bias_ref[pl.ds(r0, block_rows), :]

    x = img_ref[...].astype(jnp.float32)
    out_ref[...] = (x * scale + bias).astype(out_ref.dtype)


def normalization(img, mean, std, *, max_block_bytes=8 * 1024 * 1024):
    """(img - mean[:,None,None]) / std[:,None,None] for an NCHW image."""
    N, C, H, W = img.shape
    rows = N * C
    L = H * W
    itemsize = jnp.dtype(img.dtype).itemsize
    sub = _sublane_multiple(img.dtype)

    # ---- tile selection ---------------------------------------------------
    bytes_per_row = L * itemsize
    min_br = rows if rows <= sub else sub  # smallest legal row-block height

    if min_br * bytes_per_row > max_block_bytes:
        # Large H*W: even one minimal row group exceeds the block budget ->
        # tile the lane axis in multiples of 128 as well.
        br = min_br
        bl = max(128, (max_block_bytes // (br * itemsize)) // 128 * 128)
    else:
        bl = L  # full lane-dense last dim (equals array dim -> always legal)
        br_cap = max(min_br, (max_block_bytes // bytes_per_row) // sub * sub)
        if rows >= 4 * sub:
            # Ensure >= ~4 row blocks so both v7x TensorCores get work and the
            # in/out DMAs pipeline; round up to the sublane multiple.
            br_target = pl.cdiv(pl.cdiv(rows, 4), sub) * sub
        else:
            br_target = rows
        br = min(br_cap, br_target, rows)
        if br >= rows:
            br = rows

    num_rb = pl.cdiv(rows, br)
    num_lb = pl.cdiv(L, bl)

    # ---- per-row scale / bias (fused divide) -------------------------------
    mean_f32 = jnp.asarray(mean, jnp.float32).reshape(C)
    std_f32 = jnp.asarray(std, jnp.float32).reshape(C)
    scale_c = 1.0 / std_f32
    bias_c = -mean_f32 * scale_c
    pad_rows = num_rb * br  # pad so in-kernel pl.ds slices never go OOB
    scale_r = jnp.tile(scale_c, N)
    bias_r = jnp.tile(bias_c, N)
    if pad_rows > rows:
        scale_r = jnp.pad(scale_r, (0, pad_rows - rows), constant_values=1.0)
        bias_r = jnp.pad(bias_r, (0, pad_rows - rows))
    scale = scale_r.reshape(pad_rows, 1)
    bias = bias_r.reshape(pad_rows, 1)

    img2d = img.reshape(rows, L)  # contiguous NCHW -> free reshape

    kernel = functools.partial(_normalize_kernel, block_rows=br)
    out2d = pl.pallas_call(
        kernel,
        out_shape=jax.ShapeDtypeStruct((rows, L), img.dtype),
        grid=(num_rb, num_lb),
        in_specs=[
            pl.BlockSpec((pad_rows, 1), lambda i, j: (0, 0)),  # scale, resident
            pl.BlockSpec((pad_rows, 1), lambda i, j: (0, 0)),  # bias, resident
            pl.BlockSpec((br, bl), lambda i, j: (i, j)),       # image tile
        ],
        out_specs=pl.BlockSpec((br, bl), lambda i, j: (i, j)),
        compiler_params=pltpu.CompilerParams(
            dimension_semantics=("parallel", "parallel"),
            # <=8 MiB blocks, double-buffered in+out ~32 MiB: fits this 48 MiB
            # scoped limit and v7x's 64 MiB physical VMEM; plenty of headroom
            # on v5e/v6e (128 MiB).
            vmem_limit_bytes=48 * 1024 * 1024,
        ),
    )(scale, bias, img2d)

    return out2d.reshape(N, C, H, W)


if __name__ == "__main__":
    key = jax.random.PRNGKey(0)

    # Classic 3-channel image-normalization constants (module __init__ args).
    mean = jnp.array([0.485, 0.456, 0.406], dtype=jnp.float32)
    std = jnp.array([0.229, 0.224, 0.225], dtype=jnp.float32)

    # Small NCHW input: batch=2, channels=3, spatial=16x16.
    img = jax.random.uniform(key, (2, 3, 16, 16), dtype=jnp.float32)

    out = normalization(img, mean, std)
    out = jax.block_until_ready(out)

    # Sanity check vs. plain JAX reference (exact divide form).
    ref = (img - mean[None, :, None, None]) / std[None, :, None, None]
    assert out.shape == img.shape
    assert jnp.allclose(out, ref, atol=1e-5, rtol=1e-5)

    print("KERNEL_OK")
</pallas_src>

<mosaic_0001>
module attributes {stable_mosaic.version = 11 : i64} {
  func.func @_normalize_kernel(%arg0: i32, %arg1: i32, %arg2: memref<6x1xf32, #tpu.memory_space<vmem>>, %arg3: memref<6x1xf32, #tpu.memory_space<vmem>>, %arg4: memref<6x256xf32, #tpu.memory_space<vmem>>, %arg5: memref<6x256xf32, #tpu.memory_space<vmem>>) attributes {dimension_semantics = [#tpu.dimension_semantics<parallel>, #tpu.dimension_semantics<parallel>], iteration_bounds = array<i64: 1, 1>, scalar_prefetch = 0 : i64, scratch_operands = 0 : i64, tpu.core_type = #tpu.core_type<tc>, window_params = [{pipeline_mode = #tpu.pipeline_mode<synchronous>, transform_indices = @transform_0, window_bounds = array<i64: 6, 1>}, {pipeline_mode = #tpu.pipeline_mode<synchronous>, transform_indices = @transform_1, window_bounds = array<i64: 6, 1>}, {transform_indices = @transform_2, window_bounds = array<i64: 6, 256>}, {transform_indices = @transform_3, window_bounds = array<i64: 6, 256>}]} {
    %c6_i32 = arith.constant 6 : i32
    %0 = arith.muli %arg0, %c6_i32 : i32
    %1 = arith.index_cast %0 : i32 to index
    %c0 = arith.constant 0 : index
    %2 = vector.load %arg2[%1, %c0] : memref<6x1xf32, #tpu.memory_space<vmem>>, vector<6x1xf32>
    %3 = arith.index_cast %0 : i32 to index
    %c0_0 = arith.constant 0 : index
    %4 = vector.load %arg3[%3, %c0_0] : memref<6x1xf32, #tpu.memory_space<vmem>>, vector<6x1xf32>
    %c0_1 = arith.constant 0 : index
    %c0_2 = arith.constant 0 : index
    %5 = vector.load %arg4[%c0_1, %c0_2] : memref<6x256xf32, #tpu.memory_space<vmem>>, vector<6x256xf32>
    %6 = vector.broadcast %2 : vector<6x1xf32> to vector<6x256xf32>
    %7 = arith.mulf %5, %6 : vector<6x256xf32>
    %8 = vector.broadcast %4 : vector<6x1xf32> to vector<6x256xf32>
    %9 = arith.addf %7, %8 : vector<6x256xf32>
    %c0_3 = arith.constant 0 : index
    %c0_4 = arith.constant 0 : index
    %10 = vector.load %arg5[%c0_3, %c0_4] : memref<6x256xf32, #tpu.memory_space<vmem>>, vector<6x256xf32>
    tpu.vector_store %arg5[%c0_3, %c0_4], %9 {strides = array<i32>} : memref<6x256xf32, #tpu.memory_space<vmem>>, vector<6x256xf32>,
    return
  }
  func.func @transform_0(%arg0: i32, %arg1: i32) -> (i32, i32) {
    %c0_i32 = arith.constant 0 : i32
    %c0_i32_0 = arith.constant 0 : i32
    %c0_i32_1 = arith.constant 0 : i32
    return %c0_i32, %c0_i32_0 : i32, i32
  }
  func.func @transform_1(%arg0: i32, %arg1: i32) -> (i32, i32) {
    %c0_i32 = arith.constant 0 : i32
    %c0_i32_0 = arith.constant 0 : i32
    %c0_i32_1 = arith.constant 0 : i32
    return %c0_i32, %c0_i32_0 : i32, i32
  }
  func.func @transform_2(%arg0: i32, %arg1: i32) -> (i32, i32) {
    %c0_i32 = arith.constant 0 : i32
    return %arg0, %arg1 : i32, i32
  }
  func.func @transform_3(%arg0: i32, %arg1: i32) -> (i32, i32) {
    %c0_i32 = arith.constant 0 : i32
    return %arg0, %arg1 : i32, i32
  }
}

</mosaic_0001>

<llo_original>
// kernel: tpu_custom_call.1
$region0: #{tpu_custom_call.1}
  #allocation0 [shape = 'u32[]', space=smem, size = 0x4, offset = 0x4, fixed_abs, tag = 'smem constant byte address 0x4 - core index']
  #allocation1 [shape = 'u32[144,128]{1,0:T(1,128)}', space=vmem, size = 0x12000, scoped, tag = 'internal scratch']
  %s0 = inlined_call_operand.vmem [shape: f32[6,1], index: 0, kind: input, shape index: {}]
  %s1 = inlined_call_operand.vmem [shape: f32[6,1], index: 1, kind: input, shape index: {}]
  %s2 = inlined_call_operand.vmem [shape: f32[6,256], index: 2, kind: input, shape index: {}]
  %s3 = inlined_call_operand.hbm [shape: f32[6,256], index: 3, kind: output, shape index: {}]
  %s4 = sld [smem:[#allocation0]]
  $region22: #{tpu_custom_call.1} parent=0
    _
  %s6 = ssub.s32 1, %s4
  %s7 = scalar_select 0, %s6, %s4
  $region1: #{tpu_custom_call.1} parent=0
    #allocation2 [shape = 'u8[8192]{0}', space=vmem, size = 0x2000, scoped, tag = 'output window, operand 0, single buffered']
    #allocation3 [shape = 's32[1]{0}', space=sflag, size = 0x4, scoped, tag = 'scoped memory for tpu_custom_call.1']
    %8 = vsyncpa [#allocation3], 0
    // Predicated region
    $region2: #{tpu_custom_call.1} parent=1 // pred_check
      _
    $region3: #{tpu_custom_call.1} parent=1 // pred_check_branch
      %10 = sbr.rel (0) target = $region5
    $region4: #{tpu_custom_call.1} parent=1 // pred_region
      _
    $region5: #{tpu_custom_call.1} parent=1 // pred_fallthru
      _
    // Predicated region
    $region6: #{tpu_custom_call.1} parent=1 // pred_check
      _
    $region7: #{tpu_custom_call.1} parent=1 // pred_check_branch
      %12 = sbr.rel (0) target = $region9
    $region8: #{tpu_custom_call.1} parent=1 // pred_region
      _
    $region9: #{tpu_custom_call.1} parent=1 // pred_fallthru
      _
    // Predicated region
    $region10: #{tpu_custom_call.1} parent=1 // pred_check
      _
    $region11: #{tpu_custom_call.1} parent=1 // pred_check_branch
      %14 = sbr.rel (0) target = $region13
    $region12: #{tpu_custom_call.1} parent=1 // pred_region
      _
    $region13: #{tpu_custom_call.1} parent=1 // pred_fallthru
      _
    %s15 = smul.u32 0, 6
    %s16 = scalar_lea.vmem %s0, %s15
    %v17 = vld [vmem:[%s16] sm:$0x3f]
    %s18 = scalar_lea.vmem %s1, %s15
    %v19 = vld [vmem:[%s18] sm:$0x3f]
    %v20 = vld [vmem:[%s2] sm:$0x3f]
    %v21 = vld [vmem:[%s2 + $0x8] sm:$0x3f]
    %23 = vset.pattern.permute.xlu0 0
    %24 = vperm.xlu0 %23, %v17
    %v25 = vpop.permute.xlu0 %24
    %v27 = vmul.f32 %v20, %v25
    %v28 = vmul.f32 %v21, %v25
    %30 = vset.pattern.permute.xlu0 0
    %31 = vperm.xlu0 %30, %v19
    %v32 = vpop.permute.xlu0 %31
    %v34 = vadd.f32 %v27, %v32
    %v35 = vadd.f32 %v28, %v32
    %36 = vst [vmem:[#allocation2] sm:$0x3f] %v34
    %37 = vst [vmem:[#allocation2 + $0x8] sm:$0x3f] %v35
    // Predicated region
    $region14: #{tpu_custom_call.1} parent=1 // pred_check
      _
    $region15: #{tpu_custom_call.1} parent=1 // pred_check_branch
      %39 = sbr.rel (0) target = $region17
    $region16: #{tpu_custom_call.1} parent=1 // pred_region
      %s41 = ssub.s32 256, 256
      %42 = vsyncadd [#allocation3], %s41
      %s44 = sshll.u32 [#allocation2], 4
      %s45 = int_to_ptr.vmem [resolvable:$true] %s44
      %47 = dma.vmem_to_hbm [thread:$0]  %s45, 256, %s3, [#allocation3]
    $region17: #{tpu_custom_call.1} parent=1 // pred_fallthru
      _
    // Predicated region
    $region18: #{tpu_custom_call.1} parent=1 // pred_check
      _
    $region19: #{tpu_custom_call.1} parent=1 // pred_check_branch
      %49 = sbr.rel (0) target = $region21
    $region20: #{tpu_custom_call.1} parent=1 // pred_region
      %50 = dma.done [#allocation3], 256
    $region21: #{tpu_custom_call.1} parent=1 // pred_fallthru
      _
    %51 = vsyncpa [#allocation3], 1

</llo_original>
